<compile_context>
chip_gen: v5e
topology: v5e:2x2
jax: 0.10.0
libtpu: 0.0.40
codegen_flags: <defaults>
</compile_context>

<pallas_src>
import jax
import jax.numpy as jnp
from jax.experimental import pallas as pl
from jax.experimental.pallas import tpu as pltpu

C_IN = 12
C_OUT = 24
LANE = 128
SUBLANE = 8

# Per-grid-step byte target (input + output block, counting the 12->16 sublane
# padding of the input tile).  ~3 MiB/step -> double-buffered VMEM ~6-7 MiB,
# safe on every generation, while per-step DMA time dwarfs the fixed overhead.
TARGET_STEP_BYTES = 3 << 20
# Spatial (lane) tile cap: 16384 lanes is already ~2.6 MiB per step.
T_HW_MAX = 16384
# Cap on batch images folded into one grid step (bounds kernel unroll).
NB_MAX = 16


def _cdiv(a, b):
    return (a + b - 1) // b


def _round_up(a, b):
    return _cdiv(a, b) * b


def conv1x1_kernel(x_ref, w_ref, b_ref, o_ref):
    # x_ref: (NB, C_IN, T_HW), w_ref: (C_OUT, C_IN), b_ref: (C_OUT, 1),
    # o_ref: (NB, C_OUT, T_HW).  Channels on sublanes, spatial on lanes.
    w = w_ref[...]
    b = b_ref[...]
    for i in range(x_ref.shape[0]):  # NB is a small static constant (<= 16)
        acc = jnp.dot(w, x_ref[i], preferred_element_type=jnp.float32)
        o_ref[i] = (acc + b).astype(o_ref.dtype)


def conv1x1_pallas(x_nchw, weight, bias):
    """x_nchw: (N, 12, H, W) f32; weight: (24, 12, 1, 1); bias: (24,)."""
    n, c_in, h, w = x_nchw.shape
    assert c_in == C_IN
    hw = h * w

    # NCHW -> (N, C_IN, H*W): free reshape, no transpose, no copy.
    x3 = x_nchw.reshape(n, c_in, hw)
    w_mat = weight[:, :, 0, 0]        # (C_OUT, C_IN) -- no transpose needed
    b_col = bias.reshape(C_OUT, 1)    # broadcasts over the lane (spatial) axis

    # Lane-dense spatial tile (multiple of 128).  No wrapper padding: a ragged
    # last block is fine because OOB input lanes only feed OOB output lanes,
    # and Pallas masks the OOB output stores.
    t_hw = min(T_HW_MAX, _round_up(hw, LANE))

    # Fold batch images into the block until the step reaches the byte target
    # (matters when H*W is small).  Keep NB a divisor of n so leading-dim
    # blocks are never ragged.
    step_cols_bytes = (_round_up(C_IN, SUBLANE) + C_OUT) * t_hw * 4
    nb_target = max(1, min(n, NB_MAX, TARGET_STEP_BYTES // step_cols_bytes))
    nb = 1
    for d in range(1, nb_target + 1):
        if n % d == 0:
            nb = d

    grid = (n // nb, _cdiv(hw, t_hw))

    # Explicit VMEM budget: double-buffered x/out blocks + resident w/b + slack.
    vmem_bytes = 2 * nb * step_cols_bytes + (1 << 20)
    vmem_bytes = min(max(vmem_bytes, 8 << 20), 48 << 20)

    # Advisory cost estimate: this kernel is HBM-bandwidth bound.
    flops = 2 * n * hw * C_IN * C_OUT
    bytes_accessed = 4 * (n * C_IN * hw + n * C_OUT * hw + C_OUT * C_IN + C_OUT)

    out3 = pl.pallas_call(
        conv1x1_kernel,
        out_shape=jax.ShapeDtypeStruct((n, C_OUT, hw), x_nchw.dtype),
        grid_spec=pl.GridSpec(
            grid=grid,
            in_specs=[
                # x tile: (NB, C_IN, T_HW); C_IN equals the full dim,
                # T_HW % 128 == 0.
                pl.BlockSpec((nb, C_IN, t_hw), lambda i, j: (i, 0, j)),
                # weight / bias stay resident (constant block index).
                pl.BlockSpec((C_OUT, C_IN), lambda i, j: (0, 0)),
                pl.BlockSpec((C_OUT, 1), lambda i, j: (0, 0)),
            ],
            out_specs=pl.BlockSpec((nb, C_OUT, t_hw), lambda i, j: (i, 0, j)),
        ),
        compiler_params=pltpu.CompilerParams(
            # Both axes independent -> sharded across v7x's 2 TensorCores
            # (free no-op on single-TC v5e/v6e).
            dimension_semantics=("parallel", "parallel"),
            vmem_limit_bytes=vmem_bytes,
        ),
        cost_estimate=pl.CostEstimate(
            flops=flops, transcendentals=0, bytes_accessed=bytes_accessed),
    )(x3, w_mat, b_col)

    # (N, C_OUT, HW) -> NCHW (free reshape).
    return out3.reshape(n, C_OUT, h, w)


def init_params(key):
    # Deterministic init mimicking PyTorch Conv2d default (uniform +/- 1/sqrt(fan_in)).
    kw, kb = jax.random.split(key)
    fan_in = C_IN * 1 * 1
    bound = 1.0 / jnp.sqrt(float(fan_in))
    weight = jax.random.uniform(kw, (C_OUT, C_IN, 1, 1), jnp.float32, -bound, bound)
    bias = jax.random.uniform(kb, (C_OUT,), jnp.float32, -bound, bound)
    return weight, bias


if __name__ == "__main__":
    key = jax.random.PRNGKey(0)
    k_x, k_p = jax.random.split(key)

    # Small shapes consistent with the module: batch=2, C_in=12, spatial=16x16.
    x = jax.random.normal(k_x, (2, C_IN, 16, 16), jnp.float32)
    weight, bias = init_params(k_p)

    y = conv1x1_pallas(x, weight, bias)
    y = jax.block_until_ready(y)

    # Sanity check against a plain-JAX reference of the 1x1 conv.
    ref = jnp.einsum("nchw,oc->nohw", x, weight[:, :, 0, 0]) + bias[None, :, None, None]
    assert y.shape == (2, C_OUT, 16, 16)
    assert jnp.allclose(y, ref, atol=1e-5, rtol=1e-5)

    print("KERNEL_OK")
</pallas_src>

<mosaic_0001>
module attributes {stable_mosaic.version = 11 : i64} {
  func.func @conv1x1_kernel(%arg0: i32, %arg1: i32, %arg2: memref<2x12x256xf32, #tpu.memory_space<vmem>>, %arg3: memref<24x12xf32, #tpu.memory_space<vmem>>, %arg4: memref<24x1xf32, #tpu.memory_space<vmem>>, %arg5: memref<2x24x256xf32, #tpu.memory_space<vmem>>) attributes {dimension_semantics = [#tpu.dimension_semantics<parallel>, #tpu.dimension_semantics<parallel>], iteration_bounds = array<i64: 1, 1>, scalar_prefetch = 0 : i64, scratch_operands = 0 : i64, tpu.core_type = #tpu.core_type<tc>, window_params = [{transform_indices = @transform_0, window_bounds = array<i64: 2, 12, 256>}, {pipeline_mode = #tpu.pipeline_mode<synchronous>, transform_indices = @transform_1, window_bounds = array<i64: 24, 12>}, {pipeline_mode = #tpu.pipeline_mode<synchronous>, transform_indices = @transform_2, window_bounds = array<i64: 24, 1>}, {transform_indices = @transform_3, window_bounds = array<i64: 2, 24, 256>}]} {
    %c0 = arith.constant 0 : index
    %c0_0 = arith.constant 0 : index
    %0 = vector.load %arg3[%c0, %c0_0] : memref<24x12xf32, #tpu.memory_space<vmem>>, vector<24x12xf32>
    %c0_1 = arith.constant 0 : index
    %c0_2 = arith.constant 0 : index
    %1 = vector.load %arg4[%c0_1, %c0_2] : memref<24x1xf32, #tpu.memory_space<vmem>>, vector<24x1xf32>
    %c0_3 = arith.constant 0 : index
    %c0_4 = arith.constant 0 : index
    %c0_5 = arith.constant 0 : index
    %2 = vector.load %arg2[%c0_3, %c0_4, %c0_5] : memref<2x12x256xf32, #tpu.memory_space<vmem>>, vector<1x12x256xf32>
    %3 = vector.shape_cast %2 : vector<1x12x256xf32> to vector<12x256xf32>
    %cst = arith.constant dense<0.000000e+00> : vector<24x256xf32>
    %4 = tpu.matmul %0, %3, %cst {dimension_numbers = #tpu.dot_dimension_numbers<[1], [0], [0], [1], [0, 0, 1, 1], [], []>} : vector<24x12xf32>, vector<12x256xf32>, vector<24x256xf32> -> vector<24x256xf32>
    %5 = vector.broadcast %1 : vector<24x1xf32> to vector<24x256xf32>
    %6 = arith.addf %4, %5 : vector<24x256xf32>
    %c0_6 = arith.constant 0 : index
    %c0_7 = arith.constant 0 : index
    %c0_8 = arith.constant 0 : index
    %7 = vector.load %arg5[%c0_6, %c0_7, %c0_8] : memref<2x24x256xf32, #tpu.memory_space<vmem>>, vector<1x24x256xf32>
    %8 = vector.shape_cast %7 : vector<1x24x256xf32> to vector<24x256xf32>
    %9 = vector.shape_cast %6 : vector<24x256xf32> to vector<1x24x256xf32>
    tpu.vector_store %arg5[%c0_6, %c0_7, %c0_8], %9 {strides = array<i32>} : memref<2x24x256xf32, #tpu.memory_space<vmem>>, vector<1x24x256xf32>,
    %c1 = arith.constant 1 : index
    %c0_9 = arith.constant 0 : index
    %c0_10 = arith.constant 0 : index
    %10 = vector.load %arg2[%c1, %c0_9, %c0_10] : memref<2x12x256xf32, #tpu.memory_space<vmem>>, vector<1x12x256xf32>
    %11 = vector.shape_cast %10 : vector<1x12x256xf32> to vector<12x256xf32>
    %cst_11 = arith.constant dense<0.000000e+00> : vector<24x256xf32>
    %12 = tpu.matmul %0, %11, %cst_11 {dimension_numbers = #tpu.dot_dimension_numbers<[1], [0], [0], [1], [0, 0, 1, 1], [], []>} : vector<24x12xf32>, vector<12x256xf32>, vector<24x256xf32> -> vector<24x256xf32>
    %13 = vector.broadcast %1 : vector<24x1xf32> to vector<24x256xf32>
    %14 = arith.addf %12, %13 : vector<24x256xf32>
    %c1_12 = arith.constant 1 : index
    %c0_13 = arith.constant 0 : index
    %c0_14 = arith.constant 0 : index
    %15 = vector.load %arg5[%c1_12, %c0_13, %c0_14] : memref<2x24x256xf32, #tpu.memory_space<vmem>>, vector<1x24x256xf32>
    %16 = vector.shape_cast %15 : vector<1x24x256xf32> to vector<24x256xf32>
    %17 = vector.shape_cast %14 : vector<24x256xf32> to vector<1x24x256xf32>
    tpu.vector_store %arg5[%c1_12, %c0_13, %c0_14], %17 {strides = array<i32>} : memref<2x24x256xf32, #tpu.memory_space<vmem>>, vector<1x24x256xf32>,
    return
  }
  func.func @transform_0(%arg0: i32, %arg1: i32) -> (i32, i32, i32) {
    %c0_i32 = arith.constant 0 : i32
    %c0_i32_0 = arith.constant 0 : i32
    return %arg0, %c0_i32, %arg1 : i32, i32, i32
  }
  func.func @transform_1(%arg0: i32, %arg1: i32) -> (i32, i32) {
    %c0_i32 = arith.constant 0 : i32
    %c0_i32_0 = arith.constant 0 : i32
    %c0_i32_1 = arith.constant 0 : i32
    return %c0_i32, %c0_i32_0 : i32, i32
  }
  func.func @transform_2(%arg0: i32, %arg1: i32) -> (i32, i32) {
    %c0_i32 = arith.constant 0 : i32
    %c0_i32_0 = arith.constant 0 : i32
    %c0_i32_1 = arith.constant 0 : i32
    return %c0_i32, %c0_i32_0 : i32, i32
  }
  func.func @transform_3(%arg0: i32, %arg1: i32) -> (i32, i32, i32) {
    %c0_i32 = arith.constant 0 : i32
    %c0_i32_0 = arith.constant 0 : i32
    return %arg0, %c0_i32, %arg1 : i32, i32, i32
  }
}

</mosaic_0001>

<llo_original>
// kernel: tpu_custom_call.1
$region0: #{tpu_custom_call.1}
  #allocation0 [shape = 'u32[]', space=smem, size = 0x4, offset = 0x4, fixed_abs, tag = 'smem constant byte address 0x4 - core index']
  #allocation1 [shape = 'u32[72,128]{1,0:T(1,128)}', space=vmem, size = 0x9000, scoped, tag = 'internal scratch']
  %s0 = inlined_call_operand.vmem [shape: f32[2,12,256], index: 0, kind: input, shape index: {}]
  %s1 = inlined_call_operand.vmem [shape: f32[24,12], index: 1, kind: input, shape index: {}]
  %s2 = inlined_call_operand.vmem [shape: f32[24,1], index: 2, kind: input, shape index: {}]
  %s3 = inlined_call_operand.hbm [shape: f32[2,24,256], index: 3, kind: output, shape index: {}]
  %s4 = sld [smem:[#allocation0]]
  $region22: #{tpu_custom_call.1} parent=0
    _
  %s6 = ssub.s32 1, %s4
  %s7 = scalar_select 0, %s6, %s4
  $region1: #{tpu_custom_call.1} parent=0
    #allocation2 [shape = 'u8[49152]{0}', space=vmem, size = 0xc000, scoped, tag = 'output window, operand 0, single buffered']
    #allocation3 [shape = 's32[1]{0}', space=sflag, size = 0x4, scoped, tag = 'scoped memory for tpu_custom_call.1']
    %8 = vsyncpa [#allocation3], 0
    // Predicated region
    $region2: #{tpu_custom_call.1} parent=1 // pred_check
      _
    $region3: #{tpu_custom_call.1} parent=1 // pred_check_branch
      %10 = sbr.rel (0) target = $region5
    $region4: #{tpu_custom_call.1} parent=1 // pred_region
      _
    $region5: #{tpu_custom_call.1} parent=1 // pred_fallthru
      _
    // Predicated region
    $region6: #{tpu_custom_call.1} parent=1 // pred_check
      _
    $region7: #{tpu_custom_call.1} parent=1 // pred_check_branch
      %12 = sbr.rel (0) target = $region9
    $region8: #{tpu_custom_call.1} parent=1 // pred_region
      _
    $region9: #{tpu_custom_call.1} parent=1 // pred_fallthru
      _
    // Predicated region
    $region10: #{tpu_custom_call.1} parent=1 // pred_check
      _
    $region11: #{tpu_custom_call.1} parent=1 // pred_check_branch
      %14 = sbr.rel (0) target = $region13
    $region12: #{tpu_custom_call.1} parent=1 // pred_region
      _
    $region13: #{tpu_custom_call.1} parent=1 // pred_fallthru
      _
    %v15 = vld [vmem:[%s1] sm:$0xff]
    %v16 = vld [vmem:[%s1 + $0x8] sm:$0xff]
    %v17 = vld [vmem:[%s1 + $0x10] sm:$0xff]
    %v18 = vld [vmem:[%s2] sm:$0xff]
    %v19 = vld [vmem:[%s2 + $0x8] sm:$0xff]
    %v20 = vld [vmem:[%s2 + $0x10] sm:$0xff]
    %v21 = vld [vmem:[%s0] sm:$0xff]
    %v22 = vld [vmem:[%s0 + $0x8] sm:$0xff]
    %v23 = vld [vmem:[%s0 + $0x10] sm:$0xf]
    %v24 = vld [vmem:[%s0 + $0x18] sm:$0xf]
    %26 = vset.pattern.permute.xlu0 0
    %27 = vperm.xlu0 %26, %v18
    %v28 = vpop.permute.xlu0 %27
    %31 = vset.pattern.permute.xlu0 0
    %32 = vperm.xlu0 %31, %v19
    %v33 = vpop.permute.xlu0 %32
    %36 = vset.pattern.permute.xlu0 0
    %37 = vperm.xlu0 %36, %v20
    %v38 = vpop.permute.xlu0 %37
    %vm40 = vcmask 97280
    %v42 = vsel %vm40, %v15, 0
    %v45 = vsel %vm40, %v16, 0
    %v48 = vsel %vm40, %v17, 0
    %vm50 = vcmask 1043456
    %v52 = vsel %vm50, %v23, 0
    %v55 = vsel %vm50, %v24, 0
    %57 = vmatpush.msra.mxu0 0.0
    %58 = vmatpush.msra.mxu0 0.0
    %59 = vmatpush.msra.mxu0 0.0
    %60 = vmatpush.msra.mxu0 0.0
    %61 = vmatpush.msra.mxu0 0.0
    %62 = vmatpush.msra.mxu0 0.0
    %63 = vmatpush.msra.mxu0 0.0
    %64 = vmatpush.msra.mxu0 0.0
    %65 = vmatpush.msra.mxu0 0.0
    %66 = vmatpush.msra.mxu0 0.0
    %67 = vmatpush.msra.mxu0 0.0
    %68 = vmatpush.msra.mxu0 0.0
    %69 = vmatpush.msra.mxu0 0.0
    %70 = vmatpush.msra.mxu0 0.0
    %71 = vmatpush.msra.mxu0 %v52
    %72 = vmatpush.msra.mxu0 %v21
    %73 = vmatmul.f32.gmra.mxu0 %v42
    %v74 = vpop.f32.mrf.mxu0
    %v75 = vadd.f32 %v28, %v74
    %76 = vmatmul.f32.gmra.mxu0 %v45
    %v77 = vpop.f32.mrf.mxu0
    %v78 = vadd.f32 %v33, %v77
    %79 = vmatmul.f32.gmra.mxu0 %v48
    %v80 = vpop.f32.mrf.mxu0
    %v81 = vadd.f32 %v38, %v80
    %82 = vdwg.mxu0
    %83 = vmatpush.msra.mxu0 0.0
    %84 = vmatpush.msra.mxu0 0.0
    %85 = vmatpush.msra.mxu0 0.0
    %86 = vmatpush.msra.mxu0 0.0
    %87 = vmatpush.msra.mxu0 0.0
    %88 = vmatpush.msra.mxu0 0.0
    %89 = vmatpush.msra.mxu0 0.0
    %90 = vmatpush.msra.mxu0 0.0
    %91 = vmatpush.msra.mxu0 0.0
    %92 = vmatpush.msra.mxu0 0.0
    %93 = vmatpush.msra.mxu0 0.0
    %94 = vmatpush.msra.mxu0 0.0
    %95 = vmatpush.msra.mxu0 0.0
    %96 = vmatpush.msra.mxu0 0.0
    %97 = vmatpush.msra.mxu0 %v55
    %98 = vmatpush.msra.mxu0 %v22
    %99 = vmatmul.f32.gmra.mxu0 %v42
    %v100 = vpop.f32.mrf.mxu0
    %v101 = vadd.f32 %v28, %v100
    %102 = vmatmul.f32.gmra.mxu0 %v45
    %v103 = vpop.f32.mrf.mxu0
    %v104 = vadd.f32 %v33, %v103
    %105 = vmatmul.f32.gmra.mxu0 %v48
    %v106 = vpop.f32.mrf.mxu0
    %v107 = vadd.f32 %v38, %v106
    %108 = vdwg.mxu0
    %109 = vst [vmem:[#allocation2] sm:$0xff] %v75
    %110 = vst [vmem:[#allocation2 + $0x8] sm:$0xff] %v101
    %111 = vst [vmem:[#allocation2 + $0x10] sm:$0xff] %v78
    %112 = vst [vmem:[#allocation2 + $0x18] sm:$0xff] %v104
    %113 = vst [vmem:[#allocation2 + $0x20] sm:$0xff] %v81
    %114 = vst [vmem:[#allocation2 + $0x28] sm:$0xff] %v107
    %s115 = scalar_lea.vmem %s0, 32
    %v116 = vld [vmem:[%s115] sm:$0xff]
    %v117 = vld [vmem:[%s115 + $0x8] sm:$0xff]
    %v118 = vld [vmem:[%s115 + $0x10] sm:$0xf]
    %v119 = vld [vmem:[%s115 + $0x18] sm:$0xf]
    %v121 = vsel %vm50, %v118, 0
    %v124 = vsel %vm50, %v119, 0
    %126 = vmatpush.msra.mxu0 0.0
    %127 = vmatpush.msra.mxu0 0.0
    %128 = vmatpush.msra.mxu0 0.0
    %129 = vmatpush.msra.mxu0 0.0
    %130 = vmatpush.msra.mxu0 0.0
    %131 = vmatpush.msra.mxu0 0.0
    %132 = vmatpush.msra.mxu0 0.0
    %133 = vmatpush.msra.mxu0 0.0
    %134 = vmatpush.msra.mxu0 0.0
    %135 = vmatpush.msra.mxu0 0.0
    %136 = vmatpush.msra.mxu0 0.0
    %137 = vmatpush.msra.mxu0 0.0
    %138 = vmatpush.msra.mxu0 0.0
    %139 = vmatpush.msra.mxu0 0.0
    %140 = vmatpush.msra.mxu0 %v121
    %141 = vmatpush.msra.mxu0 %v116
    %142 = vmatmul.f32.gmra.mxu0 %v42
    %v143 = vpop.f32.mrf.mxu0
    %v144 = vadd.f32 %v28, %v143
    %145 = vmatmul.f32.gmra.mxu0 %v45
    %v146 = vpop.f32.mrf.mxu0
    %v147 = vadd.f32 %v33, %v146
    %148 = vmatmul.f32.gmra.mxu0 %v48
    %v149 = vpop.f32.mrf.mxu0
    %v150 = vadd.f32 %v38, %v149
    %151 = vdwg.mxu0
    %152 = vmatpush.msra.mxu0 0.0
    %153 = vmatpush.msra.mxu0 0.0
    %154 = vmatpush.msra.mxu0 0.0
    %155 = vmatpush.msra.mxu0 0.0
    %156 = vmatpush.msra.mxu0 0.0
    %157 = vmatpush.msra.mxu0 0.0
    %158 = vmatpush.msra.mxu0 0.0
    %159 = vmatpush.msra.mxu0 0.0
    %160 = vmatpush.msra.mxu0 0.0
    %161 = vmatpush.msra.mxu0 0.0
    %162 = vmatpush.msra.mxu0 0.0
    %163 = vmatpush.msra.mxu0 0.0
    %164 = vmatpush.msra.mxu0 0.0
    %165 = vmatpush.msra.mxu0 0.0
    %166 = vmatpush.msra.mxu0 %v124
    %167 = vmatpush.msra.mxu0 %v117
    %168 = vmatmul.f32.gmra.mxu0 %v42
    %v169 = vpop.f32.mrf.mxu0
    %v170 = vadd.f32 %v28, %v169
    %171 = vmatmul.f32.gmra.mxu0 %v45
    %v172 = vpop.f32.mrf.mxu0
    %v173 = vadd.f32 %v33, %v172
    %174 = vmatmul.f32.gmra.mxu0 %v48
    %v175 = vpop.f32.mrf.mxu0
    %v176 = vadd.f32 %v38, %v175
    %177 = vdwg.mxu0
    %s178 = scalar_lea.vmem [#allocation2], 48
    %179 = vst [vmem:[%s178] sm:$0xff] %v144
    %180 = vst [vmem:[%s178 + $0x8] sm:$0xff] %v170
    %181 = vst [vmem:[%s178 + $0x10] sm:$0xff] %v147
    %182 = vst [vmem:[%s178 + $0x18] sm:$0xff] %v173
    %183 = vst [vmem:[%s178 + $0x20] sm:$0xff] %v150
    %184 = vst [vmem:[%s178 + $0x28] sm:$0xff] %v176
    // Predicated region
    $region14: #{tpu_custom_call.1} parent=1 // pred_check
      _
    $region15: #{tpu_custom_call.1} parent=1 // pred_check_branch
      %186 = sbr.rel (0) target = $region17
    $region16: #{tpu_custom_call.1} parent=1 // pred_region
      %188 = vsyncadd [#allocation3], 0
      %s189 = sshll.u32 [#allocation2], 4
      %s190 = int_to_ptr.vmem [resolvable:$true] %s189
      %s191 = sshll.u32 %s3, 4
      %s192 = int_to_ptr.hbm [resolvable:$true] %s191
      %197 = dma.vmem_to_hbm [thread:$0]  %s190, 1536, %s192, [#allocation3], 256, 256, 16
    $region17: #{tpu_custom_call.1} parent=1 // pred_fallthru
      _
    // Predicated region
    $region18: #{tpu_custom_call.1} parent=1 // pred_check
      _
    $region19: #{tpu_custom_call.1} parent=1 // pred_check_branch
      %199 = sbr.rel (0) target = $region21
    $region20: #{tpu_custom_call.1} parent=1 // pred_region
      %201 = dma.done [#allocation3], 1536
    $region21: #{tpu_custom_call.1} parent=1 // pred_fallthru
      _
    %202 = vsyncpa [#allocation3], 1

</llo_original>
